<compile_context>
chip_gen: v7x
topology: tpu7x:2x2x1
jax: 0.10.0
libtpu: 0.0.40
codegen_flags: <defaults>
</compile_context>

<pallas_src>
import jax
import jax.numpy as jnp
from jax.experimental import pallas as pl
from jax.experimental.pallas import tpu as pltpu


# --------------------------------------------------------------------------- #
# Pallas kernel: one (batch, HW-tile) block per grid step.
# --------------------------------------------------------------------------- #
def _al_net_kernel(scal_ref,                       # scalar prefetch (SMEM, f32[5])
                   x_ref, mask_ref, small_ref,     # (1,C,T), (1,C,T), (1,3,T)
                   l20sum_ref, v0wsum_ref, l2last_ref,   # (1,C,T) each
                   v_out_ref, x_out_ref, l1_out_ref, l2_out_ref):
    g1 = scal_ref[0]        # gamma1[0, 0]
    g2 = scal_ref[1]        # self.gamma2
    inv_g2 = scal_ref[2]    # 1 / gamma2
    inv_g0 = scal_ref[3]    # 1 / gamma0
    gamma = scal_ref[4]     # gamma0 / gamma1[0, 0]

    x = x_ref[0]            # (C, T)
    mask = mask_ref[0]      # (C, T)
    l2_last = l2last_ref[0]  # (C, T)  lamda_20[..., -1]

    s = small_ref[0]        # (3, T): [mask_sum, measurement, lamda_1]
    msum = s[0:1, :]
    meas = s[1:2, :]
    lam1 = s[2:3, :]

    # img = x - lamda_2 / gamma2 ; fed to Visual_Transformer in the original.
    # TODO(synk): Visual_Transformer definition is not provided in the source;
    # using an identity surrogate v = img (x1..x5 pass through unchanged).
    v = x - l2_last * inv_g2

    # lamda_1 update (channel reduction of mask * x)
    lam1_new = lam1 - g1 * (meas - jnp.sum(mask * x, axis=0, keepdims=True))

    # lamda_2 update (kept in general form; do not simplify for the surrogate)
    l2_new = l2_last - g2 * (x - v)

    # Prior accumulation was pre-reduced in the wrapper:
    #   l20sum = sum_p lamda_20[..., p],  v0wsum = sum_p gamma20[p] * v0[..., p]
    xb = -mask * lam1_new + l20sum_ref[0] + v0wsum_ref[0] + l2_new + g2 * v
    x_b = xb * inv_g0

    denom = msum + gamma
    r = pl.reciprocal(denom, approx=True)     # EUP slot
    r = r * (2.0 - denom * r)                 # Newton step 1
    r = r * (2.0 - denom * r)                 # Newton step 2 -> f32 accuracy
    x_new = x_b + mask * ((meas - jnp.sum(mask * x_b, axis=0, keepdims=True)) * r)

    v_out_ref[0] = v
    x_out_ref[0] = x_new
    l1_out_ref[0] = lam1_new
    l2_out_ref[0] = l2_new


def _round_up(n, m):
    return ((n + m - 1) // m) * m


# --------------------------------------------------------------------------- #
# Wrapper (parameter handling, prior pre-reduction, lane-dense reshapes).
# --------------------------------------------------------------------------- #
class ALNetPallas:
    """JAX/Pallas port of AL_net. gamma2 is the module parameter (init = 1.0)."""

    def __init__(self, args, number1, number):
        self.pres_ch = args['pres_input']
        self.prior = number
        self.gamma1_param = jnp.ones((1,), jnp.float32)   # self.gamma1 (unused in fwd)
        self.gamma2 = jnp.ones((1,), jnp.float32)         # torch.Tensor([1])

    def __call__(self, v0, x, lamda_1, lamda_20, gamma1, gamma20, mask,
                 mask_sum, measurement, measurement_mean, iter_,
                 x1=None, x2=None, x3=None, x4=None, x5=None):
        f32 = jnp.float32
        B, C, H, W = mask.shape
        P = self.prior
        HW = H * W

        # ---- prior-axis pre-reduction (single fused XLA pass, no transposes) ----
        g2 = self.gamma2[0].astype(f32)
        g1 = gamma1[0, 0].astype(f32)
        g20 = gamma20[0, 0, :P - 1].astype(f32)                       # (P-1,)

        l2_last = lamda_20[..., -1].astype(f32)                       # (B,C,H,W)
        l20_sum = jnp.sum(lamda_20[..., :P - 1].astype(f32), axis=-1)  # (B,C,H,W)
        v0_wsum = jnp.sum(v0[..., :P - 1].astype(f32) * g20, axis=-1)  # (B,C,H,W)

        gamma0 = jnp.sum(g20) + g2
        scalars = jnp.stack([g1, g2, 1.0 / g2, 1.0 / gamma0,
                             gamma0 / g1]).astype(f32)                # (5,)

        # Pack the three single-channel maps -> one DMA per grid step.
        small = jnp.concatenate([mask_sum.astype(f32),
                                 measurement.astype(f32),
                                 lamda_1.astype(f32)], axis=1)        # (B,3,H,W)

        # ---- lane-dense flattening + tile-size selection (fits all generations) ----
        rows_per_lane = 8 * C + 4                 # live f32 rows per lane column
        vmem_budget = 8 * 1024 * 1024             # bytes; << default scoped VMEM
        t_max = max(128, (vmem_budget // (rows_per_lane * 4 * 2)) // 128 * 128)
        hw128 = _round_up(HW, 128)
        T = min(t_max, hw128)
        n_t = pl.cdiv(hw128, T)
        hw_pad = n_t * T

        def flat(a, c):
            a = a.astype(f32).reshape(B, c, HW)
            if hw_pad != HW:
                a = jnp.pad(a, ((0, 0), (0, 0), (0, hw_pad - HW)))
            return a

        x_f = flat(x, C)
        mask_f = flat(mask, C)
        small_f = flat(small, 3)
        l20_f = flat(l20_sum, C)
        v0w_f = flat(v0_wsum, C)
        l2l_f = flat(l2_last, C)

        chw_spec = pl.BlockSpec((1, C, T), lambda b, t, *_: (b, 0, t))
        small_spec = pl.BlockSpec((1, 3, T), lambda b, t, *_: (b, 0, t))
        one_spec = pl.BlockSpec((1, 1, T), lambda b, t, *_: (b, 0, t))

        grid_spec = pltpu.PrefetchScalarGridSpec(
            num_scalar_prefetch=1,
            grid=(B, n_t),
            in_specs=[chw_spec,        # x
                      chw_spec,        # mask
                      small_spec,      # [mask_sum, measurement, lamda_1]
                      chw_spec,        # lamda_20 prior-sum
                      chw_spec,        # gamma20-weighted v0 prior-sum
                      chw_spec],       # lamda_20[..., -1]
            out_specs=[chw_spec,       # v
                       chw_spec,       # x (new)
                       one_spec,       # lamda_1 (new)
                       chw_spec],      # lamda_2 (new)
        )

        out_shapes = (
            jax.ShapeDtypeStruct((B, C, hw_pad), f32),
            jax.ShapeDtypeStruct((B, C, hw_pad), f32),
            jax.ShapeDtypeStruct((B, 1, hw_pad), f32),
            jax.ShapeDtypeStruct((B, C, hw_pad), f32),
        )

        v_p, x_p, l1_p, l2_p = pl.pallas_call(
            _al_net_kernel,
            out_shape=out_shapes,
            grid_spec=grid_spec,
            compiler_params=pltpu.CompilerParams(
                dimension_semantics=("parallel", "parallel")),
        )(scalars, x_f, mask_f, small_f, l20_f, v0w_f, l2l_f)

        def unflat(a, c):
            return a[:, :, :HW].reshape(B, c, H, W)

        return (unflat(v_p, C), unflat(x_p, C), x1, x2, x3, x4, x5,
                self.gamma2, unflat(l1_p, 1), unflat(l2_p, C))


# --------------------------------------------------------------------------- #
# Pure-JAX reference (mirrors the PyTorch forward, with the same v surrogate).
# --------------------------------------------------------------------------- #
def _al_net_ref(gamma2, prior, v0, x, lamda_1, lamda_20, gamma1, gamma20,
                mask, mask_sum, measurement):
    g2 = gamma2[0]
    lamda_2 = lamda_20[..., -1]
    v = x - lamda_2 / g2
    lamda_1n = lamda_1 - gamma1[0, 0] * (
        measurement - jnp.sum(mask * x, axis=1, keepdims=True))
    lamda_2n = lamda_2 - g2 * (x - v)
    gamma0 = jnp.float32(0.0)
    xb = -mask * lamda_1n
    for p in range(prior - 1):
        gamma0 = gamma0 + gamma20[0, 0, p]
        xb = xb + lamda_20[..., p] + gamma20[0, 0, p] * v0[..., p]
    gamma0 = gamma0 + g2
    xb = xb + lamda_2n + g2 * v
    gamma = gamma0 / gamma1[0, 0]
    x_b = xb / gamma0
    x_new = x_b + mask * (measurement - jnp.sum(mask * x_b, axis=1, keepdims=True)) \
        / (mask_sum + gamma)
    return v, x_new, lamda_1n, lamda_2n


if __name__ == "__main__":
    key = jax.random.PRNGKey(0)
    B, C, H, W, P = 2, 4, 16, 16, 3

    keys = jax.random.split(key, 8)
    v0 = jax.random.normal(keys[0], (B, C, H, W, P), jnp.float32)
    x = jax.random.normal(keys[1], (B, C, H, W), jnp.float32)
    lamda_1 = jax.random.normal(keys[2], (B, 1, H, W), jnp.float32) * 0.1
    lamda_20 = jax.random.normal(keys[3], (B, C, H, W, P), jnp.float32) * 0.1
    gamma1 = jnp.array([[1.0]], jnp.float32)
    gamma20 = jax.random.uniform(keys[4], (1, 1, P), jnp.float32,
                                 minval=0.5, maxval=1.5)
    mask = (jax.random.uniform(keys[5], (B, C, H, W)) > 0.5).astype(jnp.float32)
    mask_sum = jnp.sum(mask * mask, axis=1, keepdims=True)
    measurement = jnp.sum(mask * jax.random.normal(keys[6], (B, C, H, W)),
                          axis=1, keepdims=True)
    measurement_mean = measurement / (mask_sum + 1e-6)

    args = {'init_input': 2, 'pres_input': 2, 'init_channels': 32}
    net = ALNetPallas(args, number1=0, number=P)

    outs = net(v0, x, lamda_1, lamda_20, gamma1, gamma20, mask, mask_sum,
               measurement, measurement_mean, iter_=0)
    jax.block_until_ready(outs[1])

    v_k, x_k, _, _, _, _, _, g2_k, l1_k, l2_k = outs
    v_r, x_r, l1_r, l2_r = _al_net_ref(net.gamma2, P, v0, x, lamda_1, lamda_20,
                                       gamma1, gamma20, mask, mask_sum,
                                       measurement)
    assert jnp.allclose(v_k, v_r, rtol=1e-5, atol=1e-5)
    assert jnp.allclose(x_k, x_r, rtol=1e-5, atol=1e-5)
    assert jnp.allclose(l1_k, l1_r, rtol=1e-5, atol=1e-5)
    assert jnp.allclose(l2_k, l2_r, rtol=1e-5, atol=1e-5)

    print("KERNEL_OK")
</pallas_src>

<mosaic_0001>
module attributes {stable_mosaic.version = 11 : i64} {
  func.func @_al_net_kernel(%arg0: i32, %arg1: i32, %arg2: memref<5xf32, #tpu.memory_space<smem>>, %arg3: memref<1x4x256xf32, #tpu.memory_space<vmem>>, %arg4: memref<1x4x256xf32, #tpu.memory_space<vmem>>, %arg5: memref<1x3x256xf32, #tpu.memory_space<vmem>>, %arg6: memref<1x4x256xf32, #tpu.memory_space<vmem>>, %arg7: memref<1x4x256xf32, #tpu.memory_space<vmem>>, %arg8: memref<1x4x256xf32, #tpu.memory_space<vmem>>, %arg9: memref<1x4x256xf32, #tpu.memory_space<vmem>>, %arg10: memref<1x4x256xf32, #tpu.memory_space<vmem>>, %arg11: memref<1x1x256xf32, #tpu.memory_space<vmem>>, %arg12: memref<1x4x256xf32, #tpu.memory_space<vmem>>) attributes {dimension_semantics = [#tpu.dimension_semantics<parallel>, #tpu.dimension_semantics<parallel>], iteration_bounds = array<i64: 2, 1>, scalar_prefetch = 1 : i64, scratch_operands = 0 : i64, tpu.core_type = #tpu.core_type<tc>, window_params = [{transform_indices = @transform_0, window_bounds = array<i64: 1, 4, 256>}, {transform_indices = @transform_1, window_bounds = array<i64: 1, 4, 256>}, {transform_indices = @transform_2, window_bounds = array<i64: 1, 3, 256>}, {transform_indices = @transform_3, window_bounds = array<i64: 1, 4, 256>}, {transform_indices = @transform_4, window_bounds = array<i64: 1, 4, 256>}, {transform_indices = @transform_5, window_bounds = array<i64: 1, 4, 256>}, {transform_indices = @transform_6, window_bounds = array<i64: 1, 4, 256>}, {transform_indices = @transform_7, window_bounds = array<i64: 1, 4, 256>}, {transform_indices = @transform_8, window_bounds = array<i64: 1, 1, 256>}, {transform_indices = @transform_9, window_bounds = array<i64: 1, 4, 256>}]} {
    %c0 = arith.constant 0 : index
    %0 = memref.load %arg2[%c0] : memref<5xf32, #tpu.memory_space<smem>>
    %c1 = arith.constant 1 : index
    %1 = memref.load %arg2[%c1] : memref<5xf32, #tpu.memory_space<smem>>
    %c2 = arith.constant 2 : index
    %2 = memref.load %arg2[%c2] : memref<5xf32, #tpu.memory_space<smem>>
    %c3 = arith.constant 3 : index
    %3 = memref.load %arg2[%c3] : memref<5xf32, #tpu.memory_space<smem>>
    %c4 = arith.constant 4 : index
    %4 = memref.load %arg2[%c4] : memref<5xf32, #tpu.memory_space<smem>>
    %c0_0 = arith.constant 0 : index
    %c0_1 = arith.constant 0 : index
    %c0_2 = arith.constant 0 : index
    %5 = vector.load %arg3[%c0_0, %c0_1, %c0_2] : memref<1x4x256xf32, #tpu.memory_space<vmem>>, vector<1x4x256xf32>
    %6 = vector.shape_cast %5 : vector<1x4x256xf32> to vector<4x256xf32>
    %c0_3 = arith.constant 0 : index
    %c0_4 = arith.constant 0 : index
    %c0_5 = arith.constant 0 : index
    %7 = vector.load %arg4[%c0_3, %c0_4, %c0_5] : memref<1x4x256xf32, #tpu.memory_space<vmem>>, vector<1x4x256xf32>
    %8 = vector.shape_cast %7 : vector<1x4x256xf32> to vector<4x256xf32>
    %c0_6 = arith.constant 0 : index
    %c0_7 = arith.constant 0 : index
    %c0_8 = arith.constant 0 : index
    %9 = vector.load %arg8[%c0_6, %c0_7, %c0_8] : memref<1x4x256xf32, #tpu.memory_space<vmem>>, vector<1x4x256xf32>
    %10 = vector.shape_cast %9 : vector<1x4x256xf32> to vector<4x256xf32>
    %c0_9 = arith.constant 0 : index
    %c0_10 = arith.constant 0 : index
    %c0_11 = arith.constant 0 : index
    %11 = vector.load %arg5[%c0_9, %c0_10, %c0_11] : memref<1x3x256xf32, #tpu.memory_space<vmem>>, vector<1x3x256xf32>
    %12 = vector.shape_cast %11 : vector<1x3x256xf32> to vector<3x256xf32>
    %13 = vector.extract_strided_slice %12 {offsets = [0, 0], sizes = [1, 256], strides = [1, 1]} : vector<3x256xf32> to vector<1x256xf32>
    %14 = vector.extract_strided_slice %12 {offsets = [1, 0], sizes = [1, 256], strides = [1, 1]} : vector<3x256xf32> to vector<1x256xf32>
    %15 = vector.extract_strided_slice %12 {offsets = [2, 0], sizes = [1, 256], strides = [1, 1]} : vector<3x256xf32> to vector<1x256xf32>
    %16 = vector.broadcast %2 : f32 to vector<4x256xf32>
    %17 = arith.mulf %10, %16 : vector<4x256xf32>
    %18 = arith.subf %6, %17 : vector<4x256xf32>
    %19 = arith.mulf %8, %6 : vector<4x256xf32>
    %cst = arith.constant dense<0.000000e+00> : vector<256xf32>
    %20 = vector.multi_reduction <add>, %19, %cst [0] : vector<4x256xf32> to vector<256xf32>
    %21 = vector.shape_cast %20 : vector<256xf32> to vector<1x256xf32>
    %22 = arith.subf %14, %21 : vector<1x256xf32>
    %23 = vector.broadcast %0 : f32 to vector<1x256xf32>
    %24 = arith.mulf %23, %22 : vector<1x256xf32>
    %25 = arith.subf %15, %24 : vector<1x256xf32>
    %26 = arith.subf %6, %18 : vector<4x256xf32>
    %27 = vector.broadcast %1 : f32 to vector<4x256xf32>
    %28 = arith.mulf %27, %26 : vector<4x256xf32>
    %29 = arith.subf %10, %28 : vector<4x256xf32>
    %cst_12 = arith.constant 0.000000e+00 : f32
    %30 = vector.broadcast %cst_12 : f32 to vector<4x256xf32>
    %31 = arith.subf %30, %8 : vector<4x256xf32>
    %32 = vector.broadcast %25 : vector<1x256xf32> to vector<4x256xf32>
    %33 = arith.mulf %31, %32 : vector<4x256xf32>
    %c0_13 = arith.constant 0 : index
    %c0_14 = arith.constant 0 : index
    %c0_15 = arith.constant 0 : index
    %34 = vector.load %arg6[%c0_13, %c0_14, %c0_15] : memref<1x4x256xf32, #tpu.memory_space<vmem>>, vector<1x4x256xf32>
    %35 = vector.shape_cast %34 : vector<1x4x256xf32> to vector<4x256xf32>
    %36 = arith.addf %33, %35 : vector<4x256xf32>
    %c0_16 = arith.constant 0 : index
    %c0_17 = arith.constant 0 : index
    %c0_18 = arith.constant 0 : index
    %37 = vector.load %arg7[%c0_16, %c0_17, %c0_18] : memref<1x4x256xf32, #tpu.memory_space<vmem>>, vector<1x4x256xf32>
    %38 = vector.shape_cast %37 : vector<1x4x256xf32> to vector<4x256xf32>
    %39 = arith.addf %36, %38 : vector<4x256xf32>
    %40 = arith.addf %39, %29 : vector<4x256xf32>
    %41 = vector.broadcast %1 : f32 to vector<4x256xf32>
    %42 = arith.mulf %41, %18 : vector<4x256xf32>
    %43 = arith.addf %40, %42 : vector<4x256xf32>
    %44 = vector.broadcast %3 : f32 to vector<4x256xf32>
    %45 = arith.mulf %43, %44 : vector<4x256xf32>
    %46 = vector.broadcast %4 : f32 to vector<1x256xf32>
    %47 = arith.addf %13, %46 : vector<1x256xf32>
    %48 = tpu.reciprocal %47 {approx = true} : vector<1x256xf32> -> vector<1x256xf32>
    %49 = arith.mulf %47, %48 : vector<1x256xf32>
    %cst_19 = arith.constant 2.000000e+00 : f32
    %50 = vector.broadcast %cst_19 : f32 to vector<1x256xf32>
    %51 = arith.subf %50, %49 : vector<1x256xf32>
    %52 = arith.mulf %48, %51 : vector<1x256xf32>
    %53 = arith.mulf %47, %52 : vector<1x256xf32>
    %cst_20 = arith.constant 2.000000e+00 : f32
    %54 = vector.broadcast %cst_20 : f32 to vector<1x256xf32>
    %55 = arith.subf %54, %53 : vector<1x256xf32>
    %56 = arith.mulf %52, %55 : vector<1x256xf32>
    %57 = arith.mulf %8, %45 : vector<4x256xf32>
    %cst_21 = arith.constant dense<0.000000e+00> : vector<256xf32>
    %58 = vector.multi_reduction <add>, %57, %cst_21 [0] : vector<4x256xf32> to vector<256xf32>
    %59 = vector.shape_cast %58 : vector<256xf32> to vector<1x256xf32>
    %60 = arith.subf %14, %59 : vector<1x256xf32>
    %61 = arith.mulf %60, %56 : vector<1x256xf32>
    %62 = vector.broadcast %61 : vector<1x256xf32> to vector<4x256xf32>
    %63 = arith.mulf %8, %62 : vector<4x256xf32>
    %64 = arith.addf %45, %63 : vector<4x256xf32>
    %c0_22 = arith.constant 0 : index
    %c0_23 = arith.constant 0 : index
    %c0_24 = arith.constant 0 : index
    %65 = vector.load %arg9[%c0_22, %c0_23, %c0_24] : memref<1x4x256xf32, #tpu.memory_space<vmem>>, vector<1x4x256xf32>
    %66 = vector.shape_cast %65 : vector<1x4x256xf32> to vector<4x256xf32>
    %67 = vector.shape_cast %18 : vector<4x256xf32> to vector<1x4x256xf32>
    tpu.vector_store %arg9[%c0_22, %c0_23, %c0_24], %67 {strides = array<i32>} : memref<1x4x256xf32, #tpu.memory_space<vmem>>, vector<1x4x256xf32>,
    %c0_25 = arith.constant 0 : index
    %c0_26 = arith.constant 0 : index
    %c0_27 = arith.constant 0 : index
    %68 = vector.load %arg10[%c0_25, %c0_26, %c0_27] : memref<1x4x256xf32, #tpu.memory_space<vmem>>, vector<1x4x256xf32>
    %69 = vector.shape_cast %68 : vector<1x4x256xf32> to vector<4x256xf32>
    %70 = vector.shape_cast %64 : vector<4x256xf32> to vector<1x4x256xf32>
    tpu.vector_store %arg10[%c0_25, %c0_26, %c0_27], %70 {strides = array<i32>} : memref<1x4x256xf32, #tpu.memory_space<vmem>>, vector<1x4x256xf32>,
    %c0_28 = arith.constant 0 : index
    %c0_29 = arith.constant 0 : index
    %c0_30 = arith.constant 0 : index
    %71 = vector.load %arg11[%c0_28, %c0_29, %c0_30] : memref<1x1x256xf32, #tpu.memory_space<vmem>>, vector<1x1x256xf32>
    %72 = vector.shape_cast %71 : vector<1x1x256xf32> to vector<1x256xf32>
    %73 = vector.shape_cast %25 : vector<1x256xf32> to vector<1x1x256xf32>
    tpu.vector_store %arg11[%c0_28, %c0_29, %c0_30], %73 {strides = array<i32>} : memref<1x1x256xf32, #tpu.memory_space<vmem>>, vector<1x1x256xf32>,
    %c0_31 = arith.constant 0 : index
    %c0_32 = arith.constant 0 : index
    %c0_33 = arith.constant 0 : index
    %74 = vector.load %arg12[%c0_31, %c0_32, %c0_33] : memref<1x4x256xf32, #tpu.memory_space<vmem>>, vector<1x4x256xf32>
    %75 = vector.shape_cast %74 : vector<1x4x256xf32> to vector<4x256xf32>
    %76 = vector.shape_cast %29 : vector<4x256xf32> to vector<1x4x256xf32>
    tpu.vector_store %arg12[%c0_31, %c0_32, %c0_33], %76 {strides = array<i32>} : memref<1x4x256xf32, #tpu.memory_space<vmem>>, vector<1x4x256xf32>,
    return
  }
  func.func @transform_0(%arg0: i32, %arg1: i32, %arg2: memref<5xf32, #tpu.memory_space<smem>>) -> (i32, i32, i32) {
    %c0_i32 = arith.constant 0 : i32
    %c0_i32_0 = arith.constant 0 : i32
    return %arg0, %c0_i32, %arg1 : i32, i32, i32
  }
  func.func @transform_1(%arg0: i32, %arg1: i32, %arg2: memref<5xf32, #tpu.memory_space<smem>>) -> (i32, i32, i32) {
    %c0_i32 = arith.constant 0 : i32
    %c0_i32_0 = arith.constant 0 : i32
    return %arg0, %c0_i32, %arg1 : i32, i32, i32
  }
  func.func @transform_2(%arg0: i32, %arg1: i32, %arg2: memref<5xf32, #tpu.memory_space<smem>>) -> (i32, i32, i32) {
    %c0_i32 = arith.constant 0 : i32
    %c0_i32_0 = arith.constant 0 : i32
    return %arg0, %c0_i32, %arg1 : i32, i32, i32
  }
  func.func @transform_3(%arg0: i32, %arg1: i32, %arg2: memref<5xf32, #tpu.memory_space<smem>>) -> (i32, i32, i32) {
    %c0_i32 = arith.constant 0 : i32
    %c0_i32_0 = arith.constant 0 : i32
    return %arg0, %c0_i32, %arg1 : i32, i32, i32
  }
  func.func @transform_4(%arg0: i32, %arg1: i32, %arg2: memref<5xf32, #tpu.memory_space<smem>>) -> (i32, i32, i32) {
    %c0_i32 = arith.constant 0 : i32
    %c0_i32_0 = arith.constant 0 : i32
    return %arg0, %c0_i32, %arg1 : i32, i32, i32
  }
  func.func @transform_5(%arg0: i32, %arg1: i32, %arg2: memref<5xf32, #tpu.memory_space<smem>>) -> (i32, i32, i32) {
    %c0_i32 = arith.constant 0 : i32
    %c0_i32_0 = arith.constant 0 : i32
    return %arg0, %c0_i32, %arg1 : i32, i32, i32
  }
  func.func @transform_6(%arg0: i32, %arg1: i32, %arg2: memref<5xf32, #tpu.memory_space<smem>>) -> (i32, i32, i32) {
    %c0_i32 = arith.constant 0 : i32
    %c0_i32_0 = arith.constant 0 : i32
    return %arg0, %c0_i32, %arg1 : i32, i32, i32
  }
  func.func @transform_7(%arg0: i32, %arg1: i32, %arg2: memref<5xf32, #tpu.memory_space<smem>>) -> (i32, i32, i32) {
    %c0_i32 = arith.constant 0 : i32
    %c0_i32_0 = arith.constant 0 : i32
    return %arg0, %c0_i32, %arg1 : i32, i32, i32
  }
  func.func @transform_8(%arg0: i32, %arg1: i32, %arg2: memref<5xf32, #tpu.memory_space<smem>>) -> (i32, i32, i32) {
    %c0_i32 = arith.constant 0 : i32
    %c0_i32_0 = arith.constant 0 : i32
    return %arg0, %c0_i32, %arg1 : i32, i32, i32
  }
  func.func @transform_9(%arg0: i32, %arg1: i32, %arg2: memref<5xf32, #tpu.memory_space<smem>>) -> (i32, i32, i32) {
    %c0_i32 = arith.constant 0 : i32
    %c0_i32_0 = arith.constant 0 : i32
    return %arg0, %c0_i32, %arg1 : i32, i32, i32
  }
}

</mosaic_0001>

<llo_original>
// kernel: tpu_custom_call.1
$region0: #{tpu_custom_call.1}
  #allocation0 [shape = 'u32[]', space=smem, size = 0x4, offset = 0x4, fixed_abs, tag = 'smem constant byte address 0x4 - core index']
  #allocation1 [shape = 'u32[144,128]{1,0:T(1,128)}', space=vmem, size = 0x12000, scoped, tag = 'internal scratch']
  #allocation2 [shape = 's32[1]{0}', space=sflag, size = 0x4, scoped, tag = 'scoped memory for tpu_custom_call.1']
  #allocation3 [shape = 'u8[512]{0}', space=smem, size = 0x200, scoped, tag = 'prefetched SMEM operand 0']
  %s0 = inlined_call_operand.vmem [shape: f32[5], index: 0, kind: input, shape index: {}]
  %s1 = inlined_call_operand.vmem [shape: f32[2,4,256], index: 1, kind: input, shape index: {}]
  %s2 = inlined_call_operand.vmem [shape: f32[2,4,256], index: 2, kind: input, shape index: {}]
  %s3 = inlined_call_operand.vmem [shape: f32[2,3,256], index: 3, kind: input, shape index: {}]
  %s4 = inlined_call_operand.hbm [shape: f32[2,4,256], index: 4, kind: input, shape index: {}]
  %s5 = inlined_call_operand.hbm [shape: f32[2,4,256], index: 5, kind: input, shape index: {}]
  %s6 = inlined_call_operand.vmem [shape: f32[2,4,256], index: 6, kind: input, shape index: {}]
  %s7 = inlined_call_operand.hbm [shape: f32[2,4,256], index: 7, kind: output, shape index: {0}]
  %s8 = inlined_call_operand.hbm [shape: f32[2,4,256], index: 8, kind: output, shape index: {1}]
  %s9 = inlined_call_operand.hbm [shape: f32[2,1,256], index: 9, kind: output, shape index: {2}]
  %s10 = inlined_call_operand.hbm [shape: f32[2,4,256], index: 10, kind: output, shape index: {3}]
  %11 = xla_tuple %s7, %s8, %s9, %s10
  %s12 = sld [smem:[#allocation0]]
  $region89: #{tpu_custom_call.1} parent=0
    _
  %s14 = ssub.s32 1, %s12
  %s15 = scalar_select 0, %s14, %s12
  %s16 = sshll.u32 %s0, 4
  %s17 = int_to_ptr.vmem [resolvable:$true] %s16
  %19 = dma.vmem_to_smem %s17, 16, [#allocation3], [#allocation2]
  %20 = dma.done [#allocation2], 16
  %21 = sfence
  $region1: #{tpu_custom_call.1} parent=0
    #allocation4 [shape = 'u8[8192]{0}', space=vmem, size = 0x2000, scoped, tag = 'input window, operand 4']
    #allocation5 [shape = 's32[2]{0}', space=sflag, size = 0x8, scoped, tag = 'scoped memory for tpu_custom_call.1']
    #allocation6 [shape = 's32[2]{0}', space=sflag, size = 0x8, scoped, tag = 'scoped memory for tpu_custom_call.1']
    #allocation7 [shape = 'u8[8192]{0}', space=vmem, size = 0x2000, scoped, tag = 'input window, operand 5']
    #allocation8 [shape = 's32[2]{0}', space=sflag, size = 0x8, scoped, tag = 'scoped memory for tpu_custom_call.1']
    #allocation9 [shape = 'u8[8192]{0}', space=vmem, size = 0x2000, scoped, tag = 'output window, operand 0']
    #allocation10 [shape = 'u8[8192]{0}', space=vmem, size = 0x2000, scoped, tag = 'output window, operand 1']
    #allocation11 [shape = 's32[2]{0}', space=sflag, size = 0x8, scoped, tag = 'scoped memory for tpu_custom_call.1']
    #allocation12 [shape = 'u8[2048]{0}', space=vmem, size = 0x800, scoped, tag = 'output window, operand 2']
    #allocation13 [shape = 'u8[8192]{0}', space=vmem, size = 0x2000, scoped, tag = 'output window, operand 3']
    #allocation14 [shape = 's32[2]{0}', space=sflag, size = 0x8, scoped, tag = 'scoped memory for tpu_custom_call.1']
    %22 = vsyncpa [#allocation5], 0
    %s23 = scalar_lea.sflag [#allocation5], 1
    %24 = vsyncpa %s23, 0
    %25 = vsyncpa [#allocation8], 0
    %s26 = scalar_lea.sflag [#allocation8], 1
    %27 = vsyncpa %s26, 0
    %28 = vsyncpa [#allocation6], 0
    %s29 = scalar_lea.sflag [#allocation6], 1
    %30 = vsyncpa %s29, 0
    %31 = vsyncpa [#allocation11], 0
    %s32 = scalar_lea.sflag [#allocation11], 1
    %33 = vsyncpa %s32, 0
    %34 = vsyncpa [#allocation14], 0
    %s35 = scalar_lea.sflag [#allocation14], 1
    %36 = vsyncpa %s35, 0
    loop: start=0, step=1, limit=4
    $region2: #{tpu_custom_call.1} parent=1 // loop_pre_header
      _
    $region3: #{tpu_custom_call.1} parent=1 // loop_header
      %s38 = sphi 0, %s42
      %p39 = scmp.ge.s32.totalorder %s38, 4
      %s45 = sphi 0, %s57
      %s46 = sphi 0, %s53
      %s47 = sphi 0, %s45
      %s48 = sphi 0, %s46
      %s49 = sphi 0, %s47
      %s50 = sphi 0, %s48
      %s62 = sphi 0, %s64
      %s65 = sphi 0, %s62
      %s66 = sphi 0, %s65
      %s82 = sphi 0, %s66
      %s90 = sphi 0, %s92
      %s93 = sphi 0, %s90
      %s94 = sphi 0, %s93
      %s110 = sphi 0, %s94
      %s118 = sphi 0, %s120
      %s121 = sphi 0, %s118
      %s122 = sphi 0, %s121
      %s138 = sphi 0, %s122
      %s146 = sphi 0, %s148
      %s149 = sphi 0, %s146
      %s150 = sphi 0, %s149
      %s166 = sphi 0, %s150
      %s174 = sphi 0, %s176
      %s177 = sphi 0, %s174
      %s178 = sphi 0, %s177
      %s194 = sphi 0, %s178
      %s202 = sphi 0, %s204
      %s205 = sphi 0, %s202
      %s206 = sphi 0, %s205
      %s222 = sphi 0, %s206
      %s230 = sphi 0, %s232
      %s233 = sphi 0, %s230
      %s234 = sphi 0, %s233
      %s250 = sphi 0, %s234
      %s258 = sphi 0, %s260
      %s261 = sphi 0, %s258
      %s262 = sphi 0, %s261
      %s278 = sphi 0, %s262
      %s286 = sphi 0, %s288
      %s289 = sphi 0, %s286
      %s290 = sphi 0, %s289
      %s306 = sphi 0, %s290
      %s314 = sphi 0, %s316
      %s317 = sphi 0, %s314
      %s318 = sphi 0, %s317
      %s334 = sphi 0, %s318
    $region4: #{tpu_custom_call.1} parent=1 // loop_header_branch
      %41 = sbr.rel (%p39) target = $region8
    $region5: #{tpu_custom_call.1} parent=1 // loop_body
      %s43 = ssub.s32 %s38, 1
      %s44 = ssub.s32 %s38, 2
      %s51 = sadd.s32 1, %s46
      %p52 = scmp.ge.s32.totalorder %s51, 1
      %s53 = scalar_select %p52, 0, %s51
      %s54 = sadd.s32 1, %s45
      %s55 = scalar_select %p52, %s54, %s45
      %p56 = scmp.ge.s32.totalorder %s55, 2
      %s57 = scalar_select %p56, 0, %s55
      %s58 = ssub.s32 %s45, %s57
      %s59 = ssub.s32 %s46, %s53
      %s60 = sor.u32 %s58, %s59
      %p61 = scmp.eq.s32.totalorder %s60, 0
      %s63 = sadd.s32 %s62, 1
      %s64 = scalar_select %p61, %s62, %s63
      %p67 = pneg %p61
      %p68 = scmp.eq.s32.totalorder %s38, 1
      %p69 = por %p67, %p68
      %p70 = scmp.ne.s32.totalorder %s62, %s65
      %p71 = scmp.eq.s32.totalorder %s38, 0
      %p72 = por %p70, %p71
      %p73 = scmp.ne.s32.totalorder %s62, %s65
      %p74 = scmp.eq.s32.totalorder %s43, 1
      %p75 = por %p73, %p74
      %p76 = scmp.ne.s32.totalorder %s65, %s66
      %p77 = scmp.eq.s32.totalorder %s43, 0
      %p78 = por %p76, %p77
      %p79 = scmp.ne.s32.totalorder %s65, %s66
      %p80 = scmp.eq.s32.totalorder %s44, 1
      %p81 = por %p79, %p80
      %p83 = scmp.ne.s32.totalorder %s66, %s82
      %p84 = scmp.eq.s32.totalorder %s44, 0
      %p85 = por %p83, %p84
      %s86 = ssub.s32 %s45, %s57
      %s87 = ssub.s32 %s46, %s53
      %s88 = sor.u32 %s86, %s87
      %p89 = scmp.eq.s32.totalorder %s88, 0
      %s91 = sadd.s32 %s90, 1
      %s92 = scalar_select %p89, %s90, %s91
      %p95 = pneg %p89
      %p96 = scmp.eq.s32.totalorder %s38, 1
      %p97 = por %p95, %p96
      %p98 = scmp.ne.s32.totalorder %s90, %s93
      %p99 = scmp.eq.s32.totalorder %s38, 0
      %p100 = por %p98, %p99
      %p101 = scmp.ne.s32.totalorder %s90, %s93
      %p102 = scmp.eq.s32.totalorder %s43, 1
      %p103 = por %p101, %p102
      %p104 = scmp.ne.s32.totalorder %s93, %s94
      %p105 = scmp.eq.s32.totalorder %s43, 0
      %p106 = por %p104, %p105
      %p107 = scmp.ne.s32.totalorder %s93, %s94
      %p108 = scmp.eq.s32.totalorder %s44, 1
      %p109 = por %p107, %p108
      %p111 = scmp.ne.s32.totalorder %s94, %s110
      %p112 = scmp.eq.s32.totalorder %s44, 0
      %p113 = por %p111, %p112
      %s114 = ssub.s32 %s45, %s57
      %s115 = ssub.s32 %s46, %s53
      %s116 = sor.u32 %s114, %s115
      %p117 = scmp.eq.s32.totalorder %s116, 0
      %s119 = sadd.s32 %s118, 1
      %s120 = scalar_select %p117, %s118, %s119
      %p123 = pneg %p117
      %p124 = scmp.eq.s32.totalorder %s38, 1
      %p125 = por %p123, %p124
      %p126 = scmp.ne.s32.totalorder %s118, %s121
      %p127 = scmp.eq.s32.totalorder %s38, 0
      %p128 = por %p126, %p127
      %p129 = scmp.ne.s32.totalorder %s118, %s121
      %p130 = scmp.eq.s32.totalorder %s43, 1
      %p131 = por %p129, %p130
      %p132 = scmp.ne.s32.totalorder %s121, %s122
      %p133 = scmp.eq.s32.totalorder %s43, 0
      %p134 = por %p132, %p133
      %p135 = scmp.ne.s32.totalorder %s121, %s122
      %p136 = scmp.eq.s32.totalorder %s44, 1
      %p137 = por %p135, %p136
      %p139 = scmp.ne.s32.totalorder %s122, %s138
      %p140 = scmp.eq.s32.totalorder %s44, 0
      %p141 = por %p139, %p140
      %s142 = ssub.s32 %s45, %s57
      %s143 = ssub.s32 %s46, %s53
      %s144 = sor.u32 %s142, %s143
      %p145 = scmp.eq.s32.totalorder %s144, 0
      %s147 = sadd.s32 %s146, 1
      %s148 = scalar_select %p145, %s146, %s147
      %p151 = pneg %p145
      %p152 = scmp.eq.s32.totalorder %s38, 1
      %p153 = por %p151, %p152
      %p154 = scmp.ne.s32.totalorder %s146, %s149
      %p155 = scmp.eq.s32.totalorder %s38, 0
      %p156 = por %p154, %p155
      %p157 = scmp.ne.s32.totalorder %s146, %s149
      %p158 = scmp.eq.s32.totalorder %s43, 1
      %p159 = por %p157, %p158
      %p160 = scmp.ne.s32.totalorder %s149, %s150
      %p161 = scmp.eq.s32.totalorder %s43, 0
      %p162 = por %p160, %p161
      %p163 = scmp.ne.s32.totalorder %s149, %s150
      %p164 = scmp.eq.s32.totalorder %s44, 1
      %p165 = por %p163, %p164
      %p167 = scmp.ne.s32.totalorder %s150, %s166
      %p168 = scmp.eq.s32.totalorder %s44, 0
      %p169 = por %p167, %p168
      %s170 = ssub.s32 %s45, %s57
      %s171 = ssub.s32 %s46, %s53
      %s172 = sor.u32 %s170, %s171
      %p173 = scmp.eq.s32.totalorder %s172, 0
      %s175 = sadd.s32 %s174, 1
      %s176 = scalar_select %p173, %s174, %s175
      %p179 = pneg %p173
      %p180 = scmp.eq.s32.totalorder %s38, 1
      %p181 = por %p179, %p180
      %p182 = scmp.ne.s32.totalorder %s174, %s177
      %p183 = scmp.eq.s32.totalorder %s38, 0
      %p184 = por %p182, %p183
      %p185 = scmp.ne.s32.totalorder %s174, %s177
      %p186 = scmp.eq.s32.totalorder %s43, 1
      %p187 = por %p185, %p186
      %p188 = scmp.ne.s32.totalorder %s177, %s178
      %p189 = scmp.eq.s32.totalorder %s43, 0
      %p190 = por %p188, %p189
      %p191 = scmp.ne.s32.totalorder %s177, %s178
      %p192 = scmp.eq.s32.totalorder %s44, 1
      %p193 = por %p191, %p192
      %p195 = scmp.ne.s32.totalorder %s178, %s194
      %p196 = scmp.eq.s32.totalorder %s44, 0
      %p197 = por %p195, %p196
      %s198 = ssub.s32 %s45, %s57
      %s199 = ssub.s32 %s46, %s53
      %s200 = sor.u32 %s198, %s199
      %p201 = scmp.eq.s32.totalorder %s200, 0
      %s203 = sadd.s32 %s202, 1
      %s204 = scalar_select %p201, %s202, %s203
      %p207 = pneg %p201
      %p208 = scmp.eq.s32.totalorder %s38, 1
      %p209 = por %p207, %p208
      %p210 = scmp.ne.s32.totalorder %s202, %s205
      %p211 = scmp.eq.s32.totalorder %s38, 0
      %p212 = por %p210, %p211
      %p213 = scmp.ne.s32.totalorder %s202, %s205
      %p214 = scmp.eq.s32.totalorder %s43, 1
      %p215 = por %p213, %p214
      %p216 = scmp.ne.s32.totalorder %s205, %s206
      %p217 = scmp.eq.s32.totalorder %s43, 0
      %p218 = por %p216, %p217
      %p219 = scmp.ne.s32.totalorder %s205, %s206
      %p220 = scmp.eq.s32.totalorder %s44, 1
      %p221 = por %p219, %p220
      %p223 = scmp.ne.s32.totalorder %s206, %s222
      %p224 = scmp.eq.s32.totalorder %s44, 0
      %p225 = por %p223, %p224
      %s226 = ssub.s32 %s45, %s57
      %s227 = ssub.s32 %s46, %s53
      %s228 = sor.u32 %s226, %s227
      %p229 = scmp.eq.s32.totalorder %s228, 0
      %s231 = sadd.s32 %s230, 1
      %s232 = scalar_select %p229, %s230, %s231
      %p235 = pneg %p229
      %p236 = scmp.eq.s32.totalorder %s38, 1
      %p237 = por %p235, %p236
      %p238 = scmp.ne.s32.totalorder %s230, %s233
      %p239 = scmp.eq.s32.totalorder %s38, 0
      %p240 = por %p238, %p239
      %p241 = scmp.ne.s32.totalorder %s230, %s233
      %p242 = scmp.eq.s32.totalorder %s43, 1
      %p243 = por %p241, %p242
      %p244 = scmp.ne.s32.totalorder %s233, %s234
      %p245 = scmp.eq.s32.totalorder %s43, 0
      %p246 = por %p244, %p245
      %p247 = scmp.ne.s32.totalorder %s233, %s234
      %p248 = scmp.eq.s32.totalorder %s44, 1
      %p249 = por %p247, %p248
      %p251 = scmp.ne.s32.totalorder %s234, %s250
      %p252 = scmp.eq.s32.totalorder %s44, 0
      %p253 = por %p251, %p252
      %s254 = ssub.s32 %s45, %s57
      %s255 = ssub.s32 %s46, %s53
      %s256 = sor.u32 %s254, %s255
      %p257 = scmp.eq.s32.totalorder %s256, 0
      %s259 = sadd.s32 %s258, 1
      %s260 = scalar_select %p257, %s258, %s259
      %p263 = pneg %p257
      %p264 = scmp.eq.s32.totalorder %s38, 1
      %p265 = por %p263, %p264
      %p266 = scmp.ne.s32.totalorder %s258, %s261
      %p267 = scmp.eq.s32.totalorder %s38, 0
      %p268 = por %p266, %p267
      %p269 = scmp.ne.s32.totalorder %s258, %s261
      %p270 = scmp.eq.s32.totalorder %s43, 1
      %p271 = por %p269, %p270
      %p272 = scmp.ne.s32.totalorder %s261, %s262
      %p273 = scmp.eq.s32.totalorder %s43, 0
      %p274 = por %p272, %p273
      %p275 = scmp.ne.s32.totalorder %s261, %s262
      %p276 = scmp.eq.s32.totalorder %s44, 1
      %p277 = por %p275, %p276
      %p279 = scmp.ne.s32.totalorder %s262, %s278
      %p280 = scmp.eq.s32.totalorder %s44, 0
      %p281 = por %p279, %p280
      %s282 = ssub.s32 %s45, %s57
      %s283 = ssub.s32 %s46, %s53
      %s284 = sor.u32 %s282, %s283
      %p285 = scmp.eq.s32.totalorder %s284, 0
      %s287 = sadd.s32 %s286, 1
      %s288 = scalar_select %p285, %s286, %s287
      %p291 = pneg %p285
      %p292 = scmp.eq.s32.totalorder %s38, 1
      %p293 = por %p291, %p292
      %p294 = scmp.ne.s32.totalorder %s286, %s289
      %p295 = scmp.eq.s32.totalorder %s38, 0
      %p296 = por %p294, %p295
      %p297 = scmp.ne.s32.totalorder %s286, %s289
      %p298 = scmp.eq.s32.totalorder %s43, 1
      %p299 = por %p297, %p298
      %p300 = scmp.ne.s32.totalorder %s289, %s290
      %p301 = scmp.eq.s32.totalorder %s43, 0
      %p302 = por %p300, %p301
      %p303 = scmp.ne.s32.totalorder %s289, %s290
      %p304 = scmp.eq.s32.totalorder %s44, 1
      %p305 = por %p303, %p304
      %p307 = scmp.ne.s32.totalorder %s290, %s306
      %p308 = scmp.eq.s32.totalorder %s44, 0
      %p309 = por %p307, %p308
      %s310 = ssub.s32 %s45, %s57
      %s311 = ssub.s32 %s46, %s53
      %s312 = sor.u32 %s310, %s311
      %p313 = scmp.eq.s32.totalorder %s312, 0
      %s315 = sadd.s32 %s314, 1
      %s316 = scalar_select %p313, %s314, %s315
      %p319 = pneg %p313
      %p320 = scmp.eq.s32.totalorder %s38, 1
      %p321 = por %p319, %p320
      %p322 = scmp.ne.s32.totalorder %s314, %s317
      %p323 = scmp.eq.s32.totalorder %s38, 0
      %p324 = por %p322, %p323
      %p325 = scmp.ne.s32.totalorder %s314, %s317
      %p326 = scmp.eq.s32.totalorder %s43, 1
      %p327 = por %p325, %p326
      %p328 = scmp.ne.s32.totalorder %s317, %s318
      %p329 = scmp.eq.s32.totalorder %s43, 0
      %p330 = por %p328, %p329
      %p331 = scmp.ne.s32.totalorder %s317, %s318
      %p332 = scmp.eq.s32.totalorder %s44, 1
      %p333 = por %p331, %p332
      %p335 = scmp.ne.s32.totalorder %s318, %s334
      %p336 = scmp.eq.s32.totalorder %s44, 0
      %p337 = por %p335, %p336
      %p338 = scmp.le.s32.totalorder 1, %s38
      %p339 = scmp.lt.s32.totalorder %s38, 3
      %p340 = pnand %p338, %p339
      %p341 = pneg %p340
      // Predicated region
      $region9: #{tpu_custom_call.1} parent=5 // pred_check
        _
      $region10: #{tpu_custom_call.1} parent=5 // pred_check_branch
        %343 = sbr.rel (%p340) target = $region12
      $region11: #{tpu_custom_call.1} parent=5 // pred_region
        %s344 = ssub.s32 %s38, 1
      $region12: #{tpu_custom_call.1} parent=5 // pred_fallthru
        _
      %p345 = scmp.lt.s32.totalorder %s38, 2
      // Predicated region
      $region13: #{tpu_custom_call.1} parent=5 // pred_check
        %p346 = pneg %p345
      $region14: #{tpu_custom_call.1} parent=5 // pred_check_branch
        %348 = sbr.rel (%p346) target = $region16
      $region15: #{tpu_custom_call.1} parent=5 // pred_region
        // Predicated region
        $region17: #{tpu_custom_call.1} parent=15 // pred_check
          %p349 = pneg %p72
        $region18: #{tpu_custom_call.1} parent=15 // pred_check_branch
          %351 = sbr.rel (%p349) target = $region20
        $region19: #{tpu_custom_call.1} parent=15 // pred_region
          %s352 = smul.u32 2, %s46
          %p353 = scmp.lt.s32.totalorder %s45, 1
          %s354 = scalar_select %p353, %s45, 1
          %p355 = scmp.lt.s32.totalorder %s352, 1
          %s356 = scalar_select %p355, %s352, 1
          %s357 = smul.addr %s354, 2
          %s358 = sadd.s32 %s356, %s357
          %s359 = smul.addr %s358, 4
          %s360 = scalar_lea.vmem %s1, %s359
          %s361 = smul.u32 2, %s46
        $region20: #{tpu_custom_call.1} parent=15 // pred_fallthru
          _
        // Predicated region
        $region21: #{tpu_custom_call.1} parent=15 // pred_check
          %p362 = pneg %p100
        $region22: #{tpu_custom_call.1} parent=15 // pred_check_branch
          %364 = sbr.rel (%p362) target = $region24
        $region23: #{tpu_custom_call.1} parent=15 // pred_region
          %s365 = smul.u32 2, %s46
          %p366 = scmp.lt.s32.totalorder %s45, 1
          %s367 = scalar_select %p366, %s45, 1
          %p368 = scmp.lt.s32.totalorder %s365, 1
          %s369 = scalar_select %p368, %s365, 1
          %s370 = smul.addr %s367, 2
          %s371 = sadd.s32 %s369, %s370
          %s372 = smul.addr %s371, 4
          %s373 = scalar_lea.vmem %s2, %s372
          %s374 = smul.u32 2, %s46
        $region24: #{tpu_custom_call.1} parent=15 // pred_fallthru
          _
        // Predicated region
        $region25: #{tpu_custom_call.1} parent=15 // pred_check
          %p375 = pneg %p128
        $region26: #{tpu_custom_call.1} parent=15 // pred_check_branch
          %377 = sbr.rel (%p375) target = $region28
        $region27: #{tpu_custom_call.1} parent=15 // pred_region
          %s378 = smul.u32 2, %s46
          %p379 = scmp.lt.s32.totalorder %s45, 1
          %s380 = scalar_select %p379, %s45, 1
          %p381 = scmp.lt.s32.totalorder %s378, 1
          %s382 = scalar_select %p381, %s378, 1
          %s383 = smul.addr %s380, 2
          %s384 = sadd.s32 %s382, %s383
          %s385 = smul.addr %s384, 4
          %s386 = scalar_lea.vmem %s3, %s385
          %s387 = smul.u32 2, %s46
        $region28: #{tpu_custom_call.1} parent=15 // pred_fallthru
          _
        // Predicated region
        $region29: #{tpu_custom_call.1} parent=15 // pred_check
          %p388 = pneg %p156
        $region30: #{tpu_custom_call.1} parent=15 // pred_check_branch
          %390 = sbr.rel (%p388) target = $region32
        $region31: #{tpu_custom_call.1} parent=15 // pred_region
          %s391 = sand.u32 %s146, 1
          %s392 = scalar_lea.sflag [#allocation5], %s391
          %s393 = sand.u32 %s146, 1
          %s394 = smul.addr %s393, 8
          %s395 = scalar_lea.vmem [#allocation4], %s394
          %s396 = smul.u32 2, %s46
          %s398 = ssub.s32 128, 128
          %399 = vsyncadd %s392, %s398
          %s400 = smul.addr %s45, 2
          %s401 = sadd.s32 %s396, %s400
          %s402 = smul.addr %s401, 64
          %s403 = scalar_lea.hbm %s4, %s402
          %s405 = sshll.u32 %s395, 4
          %s406 = int_to_ptr.vmem [resolvable:$true] %s405
          %408 = dma.hbm_to_vmem [thread:$0]  %s403, 128, %s406, %s392
        $region32: #{tpu_custom_call.1} parent=15 // pred_fallthru
          _
        // Predicated region
        $region33: #{tpu_custom_call.1} parent=15 // pred_check
          %p409 = pneg %p184
        $region34: #{tpu_custom_call.1} parent=15 // pred_check_branch
          %411 = sbr.rel (%p409) target = $region36
        $region35: #{tpu_custom_call.1} parent=15 // pred_region
          %s412 = sand.u32 %s174, 1
          %s413 = scalar_lea.sflag [#allocation8], %s412
          %s414 = sand.u32 %s174, 1
          %s415 = smul.addr %s414, 8
          %s416 = scalar_lea.vmem [#allocation7], %s415
          %s417 = smul.u32 2, %s46
          %s419 = ssub.s32 128, 128
          %420 = vsyncadd %s413, %s419
          %s421 = smul.addr %s45, 2
          %s422 = sadd.s32 %s417, %s421
          %s423 = smul.addr %s422, 64
          %s424 = scalar_lea.hbm %s5, %s423
          %s426 = sshll.u32 %s416, 4
          %s427 = int_to_ptr.vmem [resolvable:$true] %s426
          %429 = dma.hbm_to_vmem [thread:$0]  %s424, 128, %s427, %s413
        $region36: #{tpu_custom_call.1} parent=15 // pred_fallthru
          _
        // Predicated region
        $region37: #{tpu_custom_call.1} parent=15 // pred_check
          %p430 = pneg %p212
        $region38: #{tpu_custom_call.1} parent=15 // pred_check_branch
          %432 = sbr.rel (%p430) target = $region40
        $region39: #{tpu_custom_call.1} parent=15 // pred_region
          %s433 = smul.u32 2, %s46
          %p434 = scmp.lt.s32.totalorder %s45, 1
          %s435 = scalar_select %p434, %s45, 1
          %p436 = scmp.lt.s32.totalorder %s433, 1
          %s437 = scalar_select %p436, %s433, 1
          %s438 = smul.addr %s435, 2
          %s439 = sadd.s32 %s437, %s438
          %s440 = smul.addr %s439, 4
          %s441 = scalar_lea.vmem %s6, %s440
          %s442 = smul.u32 2, %s46
        $region40: #{tpu_custom_call.1} parent=15 // pred_fallthru
          _
      $region16: #{tpu_custom_call.1} parent=5 // pred_fallthru
        _
      %p443 = scmp.le.s32.totalorder 1, %s38
      %p444 = scmp.lt.s32.totalorder %s38, 3
      %p445 = pnand %p443, %p444
      %p446 = pneg %p445
      // Predicated region
      $region41: #{tpu_custom_call.1} parent=5 // pred_check
        _
      $region42: #{tpu_custom_call.1} parent=5 // pred_check_branch
        %448 = sbr.rel (%p445) target = $region44
      $region43: #{tpu_custom_call.1} parent=5 // pred_region
        %s449 = ssub.s32 %s38, 1
        %s450 = sand.u32 %s149, 1
        %s451 = scalar_lea.sflag [#allocation5], %s450
        %s452 = sand.u32 %s149, 1
        %s453 = smul.addr %s452, 8
        %s454 = scalar_lea.vmem [#allocation4], %s453
        // Predicated region
        $region45: #{tpu_custom_call.1} parent=43 // pred_check
          %p455 = pneg %p162
        $region46: #{tpu_custom_call.1} parent=43 // pred_check_branch
          %457 = sbr.rel (%p455) target = $region48
        $region47: #{tpu_custom_call.1} parent=43 // pred_region
          %458 = dma.done %s451, 128
        $region48: #{tpu_custom_call.1} parent=43 // pred_fallthru
          _
        %s459 = sand.u32 %s177, 1
        %s460 = scalar_lea.sflag [#allocation8], %s459
        %s461 = sand.u32 %s177, 1
        %s462 = smul.addr %s461, 8
        %s463 = scalar_lea.vmem [#allocation7], %s462
        // Predicated region
        $region49: #{tpu_custom_call.1} parent=43 // pred_check
          %p464 = pneg %p190
        $region50: #{tpu_custom_call.1} parent=43 // pred_check_branch
          %466 = sbr.rel (%p464) target = $region52
        $region51: #{tpu_custom_call.1} parent=43 // pred_region
          %467 = dma.done %s460, 128
        $region52: #{tpu_custom_call.1} parent=43 // pred_fallthru
          _
        %s468 = smul.u32 2, %s48
        %p469 = scmp.lt.s32.totalorder %s47, 1
        %s470 = scalar_select %p469, %s47, 1
        %p471 = scmp.lt.s32.totalorder %s468, 1
        %s472 = scalar_select %p471, %s468, 1
        %s473 = smul.addr %s470, 2
        %s474 = sadd.s32 %s472, %s473
        %s475 = smul.addr %s474, 4
        %s476 = scalar_lea.vmem %s1, %s475
        %p477 = pneg %p78
        %p478 = pneg %p75
        %s479 = smul.u32 2, %s48
        %p480 = scmp.lt.s32.totalorder %s47, 1
        %s481 = scalar_select %p480, %s47, 1
        %p482 = scmp.lt.s32.totalorder %s479, 1
        %s483 = scalar_select %p482, %s479, 1
        %s484 = smul.addr %s481, 2
        %s485 = sadd.s32 %s483, %s484
        %s486 = smul.addr %s485, 4
        %s487 = scalar_lea.vmem %s2, %s486
        %p488 = pneg %p106
        %p489 = pneg %p103
        %s490 = smul.u32 2, %s48
        %p491 = scmp.lt.s32.totalorder %s47, 1
        %s492 = scalar_select %p491, %s47, 1
        %p493 = scmp.lt.s32.totalorder %s490, 1
        %s494 = scalar_select %p493, %s490, 1
        %s495 = smul.addr %s492, 2
        %s496 = sadd.s32 %s494, %s495
        %s497 = smul.addr %s496, 4
        %s498 = scalar_lea.vmem %s3, %s497
        %p499 = pneg %p134
        %p500 = pneg %p131
        %s501 = sand.u32 %s149, 1
        %s502 = scalar_lea.sflag [#allocation5], %s501
        %s503 = sand.u32 %s149, 1
        %s504 = smul.addr %s503, 8
        %s505 = scalar_lea.vmem [#allocation4], %s504
        %p506 = pneg %p162
        %p507 = pneg %p159
        %s508 = sand.u32 %s177, 1
        %s509 = scalar_lea.sflag [#allocation8], %s508
        %s510 = sand.u32 %s177, 1
        %s511 = smul.addr %s510, 8
        %s512 = scalar_lea.vmem [#allocation7], %s511
        %p513 = pneg %p190
        %p514 = pneg %p187
        %s515 = smul.u32 2, %s48
        %p516 = scmp.lt.s32.totalorder %s47, 1
        %s517 = scalar_select %p516, %s47, 1
        %p518 = scmp.lt.s32.totalorder %s515, 1
        %s519 = scalar_select %p518, %s515, 1
        %s520 = smul.addr %s517, 2
        %s521 = sadd.s32 %s519, %s520
        %s522 = smul.addr %s521, 4
        %s523 = scalar_lea.vmem %s6, %s522
        %p524 = pneg %p218
        %p525 = pneg %p215
        %p526 = pneg %p246
        %p527 = pneg %p243
        %s528 = sand.u32 %s233, 1
        %s529 = scalar_lea.sflag [#allocation6], %s528
        %s530 = sand.u32 %s233, 1
        %s531 = smul.addr %s530, 8
        %s532 = scalar_lea.vmem [#allocation9], %s531
        %p533 = pneg %p274
        %p534 = pneg %p271
        %s535 = sand.u32 %s43, 1
        %s536 = scalar_lea.sflag [#allocation11], %s535
        %s537 = sand.u32 %s261, 1
        %s538 = smul.addr %s537, 8
        %s539 = scalar_lea.vmem [#allocation10], %s538
        %p540 = pneg %p302
        %p541 = pneg %p299
        %s542 = sand.u32 %s43, 1
        %s543 = scalar_lea.sflag [#allocation11], %s542
        %s544 = sand.u32 %s289, 1
        %s545 = smul.addr %s544, 2
        %s546 = scalar_lea.vmem [#allocation12], %s545
        %p547 = pneg %p330
        %p548 = pneg %p327
        %s549 = sand.u32 %s317, 1
        %s550 = scalar_lea.sflag [#allocation14], %s549
        %s551 = sand.u32 %s317, 1
        %s552 = smul.addr %s551, 8
        %s553 = scalar_lea.vmem [#allocation13], %s552
        %s554 = smul.u32 2, %s48
        %p555 = scmp.lt.s32.totalorder %s47, 1
        %s556 = scalar_select %p555, %s47, 1
        %p557 = scmp.lt.s32.totalorder %s554, 1
        %s558 = scalar_select %p557, %s554, 1
        %s559 = smul.addr %s556, 2
        %s560 = sadd.s32 %s558, %s559
        %s561 = smul.addr %s560, 4
        %s562 = scalar_lea.vmem %s1, %s561
        %s563 = smul.u32 2, %s48
        %s564 = smul.u32 2, %s48
        %p565 = scmp.lt.s32.totalorder %s47, 1
        %s566 = scalar_select %p565, %s47, 1
        %p567 = scmp.lt.s32.totalorder %s564, 1
        %s568 = scalar_select %p567, %s564, 1
        %s569 = smul.addr %s566, 2
        %s570 = sadd.s32 %s568, %s569
        %s571 = smul.addr %s570, 4
        %s572 = scalar_lea.vmem %s2, %s571
        %s573 = smul.u32 2, %s48
        %s574 = smul.u32 2, %s48
        %p575 = scmp.lt.s32.totalorder %s47, 1
        %s576 = scalar_select %p575, %s47, 1
        %p577 = scmp.lt.s32.totalorder %s574, 1
        %s578 = scalar_select %p577, %s574, 1
        %s579 = smul.addr %s576, 2
        %s580 = sadd.s32 %s578, %s579
        %s581 = smul.addr %s580, 4
        %s582 = scalar_lea.vmem %s3, %s581
        %s583 = smul.u32 2, %s48
        %s584 = smul.u32 2, %s48
        %s585 = smul.u32 2, %s48
        %s586 = smul.u32 2, %s48
        %p587 = scmp.lt.s32.totalorder %s47, 1
        %s588 = scalar_select %p587, %s47, 1
        %p589 = scmp.lt.s32.totalorder %s586, 1
        %s590 = scalar_select %p589, %s586, 1
        %s591 = smul.addr %s588, 2
        %s592 = sadd.s32 %s590, %s591
        %s593 = smul.addr %s592, 4
        %s594 = scalar_lea.vmem %s6, %s593
        %s595 = smul.u32 2, %s48
        %s596 = smul.u32 2, %s48
        %s597 = smul.u32 2, %s48
        %s598 = smul.u32 2, %s48
        %s599 = smul.u32 2, %s48
        %s600 = sld [smem:[#allocation3]]
        %s601 = sld [smem:[#allocation3 + $0x1]]
        %s602 = sld [smem:[#allocation3 + $0x2]]
        %s603 = sld [smem:[#allocation3 + $0x3]]
        %s604 = sld [smem:[#allocation3 + $0x4]]
        %v605 = vld [vmem:[%s562] sm:$0xff]
        %v606 = vld [vmem:[%s572] sm:$0xff]
        %v607 = vld [vmem:[%s594] sm:$0xff]
        %v608 = vld [vmem:[%s582] sm:$0x77]
        %v609 = vstv %s602
        %v610 = vmul.f32 %v607, %v609
        %v611 = vsub.f32 %v605, %v610
        %v612 = vmul.f32 %v606, %v605
        %v614 = vcombine.high %v612, %v612
        %vm616 = vcmask 1043456
        %v617 = vsel %vm616, %v612, 0.0
        %v618 = vrot.slane %v617, 4
        %v619 = vadd.f32 %v617, %v618
        %v620 = vrot.slane %v619, 2
        %v621 = vadd.f32 %v619, %v620
        %v622 = vrot.slane %v621, 1
        %v623 = vadd.f32 %v621, %v622
        %v624 = vsel %vm616, %v614, 0.0
        %v625 = vrot.slane %v624, 4
        %v626 = vadd.f32 %v624, %v625
        %v627 = vrot.slane %v626, 2
        %v628 = vadd.f32 %v626, %v627
        %v629 = vrot.slane %v628, 1
        %v630 = vadd.f32 %v628, %v629
        %v633 = vcombine.low %v623, %v630
        %v634 = vrot.slane %v633, 7
        %v636 = vsub.f32 %v608, %v634
        %v637 = vstv %s600
        %v638 = vmul.f32 %v637, %v636
        %v640 = vrot.slane %v638, 7
        %v642 = vsub.f32 %v608, %v640
        %v643 = vsub.f32 %v605, %v611
        %v644 = vstv %s601
        %v645 = vmul.f32 %v644, %v643
        %v646 = vsub.f32 %v607, %v645
        %v647 = vsub.f32 0.0, %v606
        %v649 = vlaneseq
        %v650 = vshrl.u32 %v649, 7
        %v651 = vsub.s32 2, %v650
        %v652 = vrot.slane %v642, %v651
        %v653 = vlaneseq
        %v654 = vshrl.u32 %v653, 7
        %v655 = vsub.s32 6, %v654
        %v656 = vrot.slane %v642, %v655
        %v659 = vlaneseq
        %v660 = vshrl.u32 %v659, 7
        %v661 = vsub.s32 2, %v660
        %v662 = vrot.slane %v652, %v661
        %v663 = vlaneseq
        %v664 = vshrl.u32 %v663, 7
        %v665 = vsub.s32 2, %v664
        %v666 = vrot.slane %v656, %v665
        %v669 = vcombine.low %v662, %v666
        %v671 = vmul.f32 %v647, %v669
        %v672 = vld [vmem:[%s454] sm:$0xff]
        %v673 = vadd.f32 %v671, %v672
        %v674 = vld [vmem:[%s463] sm:$0xff]
        %v675 = vadd.f32 %v673, %v674
        %v676 = vadd.f32 %v675, %v646
        %v677 = vmul.f32 %v644, %v611
        %v678 = vadd.f32 %v676, %v677
        %v679 = vstv %s603
        %v680 = vmul.f32 %v678, %v679
        %v681 = vstv %s604
        %v682 = vadd.f32 %v608, %v681
        %v683 = vrcp.pop %v682
        %v684 = vmul.f32 %v682, %v683
        %v685 = vsub.f32 2.0, %v684
        %v686 = vmul.f32 %v683, %v685
        %v687 = vmul.f32 %v682, %v686
        %v688 = vsub.f32 2.0, %v687
        %v689 = vmul.f32 %v686, %v688
        %v690 = vmul.f32 %v606, %v680
        %v692 = vcombine.high %v690, %v690
        %v694 = vsel %vm616, %v690, 0.0
        %v695 = vrot.slane %v694, 4
        %v696 = vadd.f32 %v694, %v695
        %v697 = vrot.slane %v696, 2
        %v698 = vadd.f32 %v696, %v697
        %v699 = vrot.slane %v698, 1
        %v700 = vadd.f32 %v698, %v699
        %v701 = vsel %vm616, %v692, 0.0
        %v702 = vrot.slane %v701, 4
        %v703 = vadd.f32 %v701, %v702
        %v704 = vrot.slane %v703, 2
        %v705 = vadd.f32 %v703, %v704
        %v706 = vrot.slane %v705, 1
        %v707 = vadd.f32 %v705, %v706
        %v710 = vcombine.low %v700, %v707
        %v711 = vrot.slane %v710, 7
        %v713 = vsub.f32 %v608, %v711
        %v715 = vrot.slane %v689, 7
        %v717 = vmul.f32 %v713, %v715
        %v719 = vlaneseq
        %v720 = vshrl.u32 %v719, 7
        %v721 = vsub.s32 1, %v720
        %v722 = vrot.slane %v717, %v721
        %v723 = vlaneseq
        %v724 = vshrl.u32 %v723, 7
        %v725 = vsub.s32 5, %v724
        %v726 = vrot.slane %v717, %v725
        %v729 = vlaneseq
        %v730 = vshrl.u32 %v729, 7
        %v731 = vsub.s32 1, %v730
        %v732 = vrot.slane %v722, %v731
        %v733 = vlaneseq
        %v734 = vshrl.u32 %v733, 7
        %v735 = vsub.s32 1, %v734
        %v736 = vrot.slane %v726, %v735
        %v739 = vcombine.low %v732, %v736
        %v741 = vmul.f32 %v606, %v739
        %v742 = vadd.f32 %v680, %v741
        %743 = vst [vmem:[%s532] sm:$0xff] %v611
        %744 = vst [vmem:[%s539] sm:$0xff] %v742
        %v746 = vunpack.c.l.s4 1966171168
        %v747 = vunpack.c.0.s8 %v746
        %v748 = vlaneseq
        %v749 = vshrl.u32 %v748, 7
        %v750 = vsub.s32 %v747, %v749
        %v751 = vrot.slane %v642, %v750
        %v753 = vunpack.c.l.s4 1966171168
        %v754 = vunpack.c.0.s8 %v753
        %v755 = vlaneseq
        %v756 = vshrl.u32 %v755, 7
        %v757 = vsub.s32 %v754, %v756
        %v758 = vrot.slane %v751, %v757
        %v759 = vcombine.high %v758, %v758
        %v761 = vlaneseq
        %vm762 = vcmp.ge.s32.totalorder %v761, 0
        %vm763 = vcmp.lt.s32.totalorder %v761, 256
        %vm764 = vmand %vm762, %vm763
        %765 = vst.msk [vmem:[%s546] sm:$0x3] %vm764, %v759
        %766 = vst [vmem:[%s553] sm:$0xff] %v646
        %s767 = sand.u32 %s233, 1
        %s768 = scalar_lea.sflag [#allocation6], %s767
        %s769 = sand.u32 %s233, 1
        %s770 = smul.addr %s769, 8
        %s771 = scalar_lea.vmem [#allocation9], %s770
        %s772 = sand.u32 %s43, 1
        %s773 = scalar_lea.sflag [#allocation11], %s772
        %s774 = sand.u32 %s261, 1
        %s775 = smul.addr %s774, 8
        %s776 = scalar_lea.vmem [#allocation10], %s775
        %s777 = sand.u32 %s43, 1
        %s778 = scalar_lea.sflag [#allocation11], %s777
        %s779 = sand.u32 %s289, 1
        %s780 = smul.addr %s779, 2
        %s781 = scalar_lea.vmem [#allocation12], %s780
        %s782 = sand.u32 %s317, 1
        %s783 = scalar_lea.sflag [#allocation14], %s782
        %s784 = sand.u32 %s317, 1
        %s785 = smul.addr %s784, 8
        %s786 = scalar_lea.vmem [#allocation13], %s785
        // Predicated region
        $region53: #{tpu_custom_call.1} parent=43 // pred_check
          %p787 = pneg %p243
        $region54: #{tpu_custom_call.1} parent=43 // pred_check_branch
          %789 = sbr.rel (%p787) target = $region56
        $region55: #{tpu_custom_call.1} parent=43 // pred_region
          %s790 = smul.u32 2, %s48
          %s792 = ssub.s32 128, 128
          %793 = vsyncadd %s768, %s792
          %s794 = smul.addr %s47, 2
          %s795 = sadd.s32 %s790, %s794
          %s796 = smul.addr %s795, 64
          %s797 = scalar_lea.hbm %s7, %s796
          %s799 = sshll.u32 %s771, 4
          %s800 = int_to_ptr.vmem [resolvable:$true] %s799
          %802 = dma.vmem_to_hbm [thread:$0]  %s800, 128, %s797, %s768
        $region56: #{tpu_custom_call.1} parent=43 // pred_fallthru
          _
        // Predicated region
        $region57: #{tpu_custom_call.1} parent=43 // pred_check
          %p803 = pneg %p271
        $region58: #{tpu_custom_call.1} parent=43 // pred_check_branch
          %805 = sbr.rel (%p803) target = $region60
        $region59: #{tpu_custom_call.1} parent=43 // pred_region
          %s806 = smul.u32 2, %s48
          %s808 = ssub.s32 128, 128
          %809 = vsyncadd %s773, %s808
          %s810 = smul.addr %s47, 2
          %s811 = sadd.s32 %s806, %s810
          %s812 = smul.addr %s811, 64
          %s813 = scalar_lea.hbm %s8, %s812
          %s815 = sshll.u32 %s776, 4
          %s816 = int_to_ptr.vmem [resolvable:$true] %s815
          %818 = dma.vmem_to_hbm [thread:$0]  %s816, 128, %s813, %s773
        $region60: #{tpu_custom_call.1} parent=43 // pred_fallthru
          _
        // Predicated region
        $region61: #{tpu_custom_call.1} parent=43 // pred_check
          %p819 = pneg %p299
        $region62: #{tpu_custom_call.1} parent=43 // pred_check_branch
          %821 = sbr.rel (%p819) target = $region64
        $region63: #{tpu_custom_call.1} parent=43 // pred_region
          %s822 = smul.u32 2, %s48
          %s824 = ssub.s32 32, 32
          %825 = vsyncadd %s778, %s824
          %s826 = smul.addr %s47, 2
          %s827 = sadd.s32 %s822, %s826
          %s828 = smul.addr %s827, 16
          %s829 = scalar_lea.hbm %s9, %s828
          %s831 = sshll.u32 %s781, 4
          %s832 = int_to_ptr.vmem [resolvable:$true] %s831
          %834 = dma.vmem_to_hbm [thread:$0]  %s832, 32, %s829, %s778
        $region64: #{tpu_custom_call.1} parent=43 // pred_fallthru
          _
        // Predicated region
        $region65: #{tpu_custom_call.1} parent=43 // pred_check
          %p835 = pneg %p327
        $region66: #{tpu_custom_call.1} parent=43 // pred_check_branch
          %837 = sbr.rel (%p835) target = $region68
        $region67: #{tpu_custom_call.1} parent=43 // pred_region
          %s838 = smul.u32 2, %s48
          %s840 = ssub.s32 128, 128
          %841 = vsyncadd %s783, %s840
          %s842 = smul.addr %s47, 2
          %s843 = sadd.s32 %s838, %s842
          %s844 = smul.addr %s843, 64
          %s845 = scalar_lea.hbm %s10, %s844
          %s847 = sshll.u32 %s786, 4
          %s848 = int_to_ptr.vmem [resolvable:$true] %s847
          %850 = dma.vmem_to_hbm [thread:$0]  %s848, 128, %s845, %s783
        $region68: #{tpu_custom_call.1} parent=43 // pred_fallthru
          _
      $region44: #{tpu_custom_call.1} parent=5 // pred_fallthru
        _
      %p851 = scmp.le.s32.totalorder 2, %s38
      // Predicated region
      $region69: #{tpu_custom_call.1} parent=5 // pred_check
        %p852 = pneg %p851
      $region70: #{tpu_custom_call.1} parent=5 // pred_check_branch
        %854 = sbr.rel (%p852) target = $region72
      $region71: #{tpu_custom_call.1} parent=5 // pred_region
        %s855 = ssub.s32 %s38, 2
        // Predicated region
        $region73: #{tpu_custom_call.1} parent=71 // pred_check
          %p856 = pneg %p249
        $region74: #{tpu_custom_call.1} parent=71 // pred_check_branch
          %858 = sbr.rel (%p856) target = $region76
        $region75: #{tpu_custom_call.1} parent=71 // pred_region
          %s859 = sand.u32 %s234, 1
          %s860 = scalar_lea.sflag [#allocation6], %s859
          %s861 = sand.u32 %s234, 1
          %s862 = smul.addr %s861, 8
          %s863 = scalar_lea.vmem [#allocation9], %s862
          %864 = dma.done %s860, 128
        $region76: #{tpu_custom_call.1} parent=71 // pred_fallthru
          _
        // Predicated region
        $region77: #{tpu_custom_call.1} parent=71 // pred_check
          %p865 = pneg %p277
        $region78: #{tpu_custom_call.1} parent=71 // pred_check_branch
          %867 = sbr.rel (%p865) target = $region80
        $region79: #{tpu_custom_call.1} parent=71 // pred_region
          %s868 = sand.u32 %s44, 1
          %s869 = scalar_lea.sflag [#allocation11], %s868
          %s870 = sand.u32 %s262, 1
          %s871 = smul.addr %s870, 8
          %s872 = scalar_lea.vmem [#allocation10], %s871
          %873 = dma.done %s869, 128
        $region80: #{tpu_custom_call.1} parent=71 // pred_fallthru
          _
        // Predicated region
        $region81: #{tpu_custom_call.1} parent=71 // pred_check
          %p874 = pneg %p305
        $region82: #{tpu_custom_call.1} parent=71 // pred_check_branch
          %876 = sbr.rel (%p874) target = $region84
        $region83: #{tpu_custom_call.1} parent=71 // pred_region
          %s877 = sand.u32 %s44, 1
          %s878 = scalar_lea.sflag [#allocation11], %s877
          %s879 = sand.u32 %s290, 1
          %s880 = smul.addr %s879, 2
          %s881 = scalar_lea.vmem [#allocation12], %s880
          %882 = dma.done %s878, 32
        $region84: #{tpu_custom_call.1} parent=71 // pred_fallthru
          _
        // Predicated region
        $region85: #{tpu_custom_call.1} parent=71 // pred_check
          %p883 = pneg %p333
        $region86: #{tpu_custom_call.1} parent=71 // pred_check_branch
          %885 = sbr.rel (%p883) target = $region88
        $region87: #{tpu_custom_call.1} parent=71 // pred_region
          %s886 = sand.u32 %s318, 1
          %s887 = scalar_lea.sflag [#allocation14], %s886
          %s888 = sand.u32 %s318, 1
          %s889 = smul.addr %s888, 8
          %s890 = scalar_lea.vmem [#allocation13], %s889
          %891 = dma.done %s887, 128
        $region88: #{tpu_custom_call.1} parent=71 // pred_fallthru
          _
      $region72: #{tpu_custom_call.1} parent=5 // pred_fallthru
        _
    $region6: #{tpu_custom_call.1} parent=1 // loop_footer
      %s42 = sadd.s32 1, %s38
    $region7: #{tpu_custom_call.1} parent=1 // loop_footer_branch
      %37 = sbr.rel target = $region3
    $region8: #{tpu_custom_call.1} parent=1 // loop_exit
      _
    %892 = vsyncpa [#allocation5], 1
    %s893 = scalar_lea.sflag [#allocation5], 1
    %894 = vsyncpa %s893, 1
    %895 = vsyncpa [#allocation8], 1
    %s896 = scalar_lea.sflag [#allocation8], 1
    %897 = vsyncpa %s896, 1
    %898 = vsyncpa [#allocation6], 1
    %s899 = scalar_lea.sflag [#allocation6], 1
    %900 = vsyncpa %s899, 1
    %901 = vsyncpa [#allocation11], 1
    %s902 = scalar_lea.sflag [#allocation11], 1
    %903 = vsyncpa %s902, 1
    %904 = vsyncpa [#allocation14], 1
    %s905 = scalar_lea.sflag [#allocation14], 1
    %906 = vsyncpa %s905, 1

</llo_original>
